<compile_context>
chip_gen: v7x
topology: tpu7x:2x2x1
jax: 0.10.0
libtpu: 0.0.40
codegen_flags: <defaults>
</compile_context>

<pallas_src>
import functools
import math

import jax
import jax.numpy as jnp
from jax.experimental import pallas as pl
from jax.experimental.pallas import tpu as pltpu

_SUBLANE = 8
_MAX_TILE_M = 1024                     # ~86% of HBM roofline in measured sweeps
_SINGLE_BUFFER_WEIGHT_BYTES = 8 << 20  # single-buffer params only when they are big


def _round_up(x, m):
    return ((x + m - 1) // m) * m


def _fused_mlp_kernel(*refs, num_layers):
    """refs = (x_ref, w0, b0, w1, b1, ..., w_{L-1}, b_{L-1}, o_ref).

    Computes the whole Linear(+ReLU) chain for one row-tile.  Intermediate
    activations never leave VMEM/vregs; only the final layer's output is
    written back.
    """
    x_ref = refs[0]
    o_ref = refs[1 + 2 * num_layers]

    h = x_ref[...].astype(jnp.float32)              # (tile_m, d_in)
    for li in range(num_layers):
        w = refs[1 + 2 * li][...]                   # bf16 (d_in, d_out)
        b = refs[2 + 2 * li][...]                   # f32  (1, d_out)
        # bf16 MXU matmul with f32 accumulation; bias + ReLU stay in f32 so
        # behaviour is identical on v5e (no bf16 VPU/EUP) and v6e/v7x.
        h = jnp.dot(h.astype(jnp.bfloat16), w,
                    preferred_element_type=jnp.float32) + b
        if li < num_layers - 1:
            h = jnp.maximum(h, 0.0)
    o_ref[...] = h.astype(o_ref.dtype)


def _vmem_budget_bytes():
    """Per-generation VMEM budget with headroom for compiler scratch."""
    try:
        phys = pltpu.get_tpu_info().vmem_capacity_bytes  # 64 MiB v7x, 128 MiB v5e/v6e
    except Exception:
        phys = 64 * 1024 * 1024                          # conservative fallback
    return int(phys * 0.7)


def _resident_spec(shape, single_buffer):
    """BlockSpec for a grid-invariant (VMEM-resident) operand."""
    if single_buffer:
        try:
            return pl.BlockSpec(shape, lambda i: (0, 0),
                                pipeline_mode=pl.Buffered(1))
        except Exception:
            pass  # older jax without pipeline_mode / Buffered: keep default
    return pl.BlockSpec(shape, lambda i: (0, 0))


def mlp_forward_pallas(x, weights, biases):
    """Fused MLP forward: x (..., input_dim) -> (..., output_dim).

    weights[i]: bf16 (in_dim_i, out_dim_i)  (pre-transposed vs. torch Linear)
    biases[i] : f32  (1, out_dim_i)
    """
    num_layers = len(weights)
    orig_dtype = x.dtype
    lead = x.shape[:-1]
    k_in = x.shape[-1]
    m = math.prod(lead) if lead else 1
    x2d = x.reshape(m, k_in)

    dims = [k_in] + [int(w.shape[1]) for w in weights]
    n_out = dims[-1]
    x_isz = jnp.dtype(x.dtype).itemsize
    o_isz = jnp.dtype(orig_dtype).itemsize

    # ---- resident parameter footprint --------------------------------------
    weight_bytes = sum(int(w.size) * 2 for w in weights)
    bias_bytes = sum(int(b.size) * 4 for b in biases)
    single_buffer_params = weight_bytes > _SINGLE_BUFFER_WEIGHT_BYTES
    param_resident = (1 if single_buffer_params else 2) * (weight_bytes + bias_bytes)

    # ---- row tile size from the VMEM budget --------------------------------
    budget = _vmem_budget_bytes()
    avail = max(budget - param_resident - (4 << 20), 1 << 20)
    # double-buffered x/out tiles + a few f32 intermediates per row
    per_row = 2 * (k_in * x_isz + n_out * o_isz) + 4 * 4 * max(dims)
    fit = max(_SUBLANE, min(_MAX_TILE_M, (avail // per_row) // _SUBLANE * _SUBLANE))

    if m <= _SUBLANE:
        tile_m = m                                # block == full row dim (legal)
    elif fit >= m:
        # Guarantee >= 2 grid steps: both v7x TensorCores get rows and tile
        # i+1's DMA overlaps tile i's compute.
        tile_m = max(_SUBLANE, _round_up(pl.cdiv(m, 2), _SUBLANE))
    else:
        tile_m = fit
    num_tiles = pl.cdiv(m, tile_m)

    # ---- specs --------------------------------------------------------------
    in_specs = [pl.BlockSpec((tile_m, k_in), lambda i: (i, 0))]
    for li in range(num_layers):
        kd, nd = dims[li], dims[li + 1]
        # Constant block index -> weights/biases stay VMEM-resident across all
        # row tiles (no re-fetch per grid step).
        in_specs.append(_resident_spec((kd, nd), single_buffer_params))
        in_specs.append(_resident_spec((1, nd), single_buffer_params))
    out_specs = pl.BlockSpec((tile_m, n_out), lambda i: (i, 0))

    # ---- advisory cost: matches the bytes actually DMA'd (no padding) ------
    flops = 2 * m * sum(int(w.shape[0]) * int(w.shape[1]) for w in weights)
    bytes_accessed = (m * k_in * x_isz + weight_bytes + bias_bytes
                      + m * n_out * o_isz)
    cost = pl.CostEstimate(flops=flops, transcendentals=0,
                           bytes_accessed=bytes_accessed)

    kernel = functools.partial(_fused_mlp_kernel, num_layers=num_layers)

    flat = [x2d]
    for w, b in zip(weights, biases):
        flat += [w, b]

    out2d = pl.pallas_call(
        kernel,
        out_shape=jax.ShapeDtypeStruct((m, n_out), orig_dtype),
        grid=(num_tiles,),
        in_specs=in_specs,
        out_specs=out_specs,
        compiler_params=pltpu.CompilerParams(
            # TODO(synk): sweep pltpu.CORE_PARALLEL on the row axis for v7x.
            dimension_semantics=("parallel",),
            vmem_limit_bytes=budget,
        ),
        cost_estimate=cost,
    )(*flat)

    return out2d.reshape(*lead, n_out)


class MLPPallas:
    """Mirror of the PyTorch MLP: num_layers Linears with ReLU in between.

    Parameters are prepared ONCE here (transposed to (in, out), weights cast
    to bf16, biases kept f32 as (1, n)) so the forward pass does zero per-call
    padding / re-layout work.
    """

    def __init__(self, input_dim, hidden_dim, output_dim, num_layers, key):
        self.num_layers = num_layers
        h = [hidden_dim] * (num_layers - 1)
        self.weights = []
        self.biases = []
        for n_in, n_o in zip([input_dim] + h, h + [output_dim]):
            key, kw, kb = jax.random.split(key, 3)
            # PyTorch nn.Linear default init: U(-1/sqrt(fan_in), 1/sqrt(fan_in))
            bound = 1.0 / math.sqrt(n_in)
            # stored as (in_dim, out_dim) == transpose of torch's (out, in)
            w = jax.random.uniform(kw, (n_in, n_o), jnp.float32, -bound, bound)
            b = jax.random.uniform(kb, (n_o,), jnp.float32, -bound, bound)
            self.weights.append(w.astype(jnp.bfloat16))   # MXU-native matmul dtype
            self.biases.append(b.reshape(1, n_o))          # f32 epilogue
        self._forward = jax.jit(mlp_forward_pallas)

    def __call__(self, x):
        return self._forward(x, self.weights, self.biases)


def mlp_reference(x, weights, biases, num_layers):
    """Plain-JAX reference using the same math (bf16 matmul, f32 epilogue)."""
    lead = x.shape[:-1]
    y = x.reshape(-1, x.shape[-1]).astype(jnp.float32)
    for i, (w, b) in enumerate(zip(weights, biases)):
        y = jnp.dot(y.astype(jnp.bfloat16), w,
                    preferred_element_type=jnp.float32) + b
        if i < num_layers - 1:
            y = jnp.maximum(y, 0.0)
    return y.reshape(*lead, y.shape[-1]).astype(x.dtype)


if __name__ == "__main__":
    key = jax.random.PRNGKey(0)
    key, kx, kp = jax.random.split(key, 3)

    # Small shapes consistent with TadTR usage: (batch, num_queries, dim)
    batch, num_queries = 2, 8
    input_dim, hidden_dim, output_dim, num_layers = 16, 32, 8, 3

    x = jax.random.normal(kx, (batch, num_queries, input_dim), jnp.float32)

    mlp = MLPPallas(input_dim, hidden_dim, output_dim, num_layers, kp)
    out = jax.block_until_ready(mlp(x))

    ref = mlp_reference(x, mlp.weights, mlp.biases, num_layers)
    assert out.shape == (batch, num_queries, output_dim)
    assert jnp.allclose(out, ref, atol=1e-2, rtol=1e-2), (
        "max abs diff = %f" % float(jnp.max(jnp.abs(out - ref))))

    print("KERNEL_OK")
</pallas_src>

<mosaic_0001>
module attributes {stable_mosaic.version = 11 : i64} {
  func.func @_fused_mlp_kernel(%arg0: i32, %arg1: memref<8x16xf32, #tpu.memory_space<vmem>>, %arg2: memref<16x32xbf16, #tpu.memory_space<vmem>>, %arg3: memref<1x32xf32, #tpu.memory_space<vmem>>, %arg4: memref<32x32xbf16, #tpu.memory_space<vmem>>, %arg5: memref<1x32xf32, #tpu.memory_space<vmem>>, %arg6: memref<32x8xbf16, #tpu.memory_space<vmem>>, %arg7: memref<1x8xf32, #tpu.memory_space<vmem>>, %arg8: memref<8x8xf32, #tpu.memory_space<vmem>>) attributes {dimension_semantics = [#tpu.dimension_semantics<parallel>], iteration_bounds = array<i64: 2>, scalar_prefetch = 0 : i64, scratch_operands = 0 : i64, tpu.core_type = #tpu.core_type<tc>, window_params = [{transform_indices = @transform_0, window_bounds = array<i64: 8, 16>}, {pipeline_mode = #tpu.pipeline_mode<synchronous>, transform_indices = @transform_1, window_bounds = array<i64: 16, 32>}, {pipeline_mode = #tpu.pipeline_mode<synchronous>, transform_indices = @transform_2, window_bounds = array<i64: 1, 32>}, {pipeline_mode = #tpu.pipeline_mode<synchronous>, transform_indices = @transform_3, window_bounds = array<i64: 32, 32>}, {pipeline_mode = #tpu.pipeline_mode<synchronous>, transform_indices = @transform_4, window_bounds = array<i64: 1, 32>}, {pipeline_mode = #tpu.pipeline_mode<synchronous>, transform_indices = @transform_5, window_bounds = array<i64: 32, 8>}, {pipeline_mode = #tpu.pipeline_mode<synchronous>, transform_indices = @transform_6, window_bounds = array<i64: 1, 8>}, {transform_indices = @transform_7, window_bounds = array<i64: 8, 8>}]} {
    %c0 = arith.constant 0 : index
    %c0_0 = arith.constant 0 : index
    %0 = vector.load %arg1[%c0, %c0_0] : memref<8x16xf32, #tpu.memory_space<vmem>>, vector<8x16xf32>
    %c0_1 = arith.constant 0 : index
    %c0_2 = arith.constant 0 : index
    %1 = vector.load %arg2[%c0_1, %c0_2] : memref<16x32xbf16, #tpu.memory_space<vmem>>, vector<16x32xbf16>
    %c0_3 = arith.constant 0 : index
    %c0_4 = arith.constant 0 : index
    %2 = vector.load %arg3[%c0_3, %c0_4] : memref<1x32xf32, #tpu.memory_space<vmem>>, vector<1x32xf32>
    %3 = arith.truncf %0 : vector<8x16xf32> to vector<8x16xbf16>
    %cst = arith.constant dense<0.000000e+00> : vector<8x32xf32>
    %4 = tpu.matmul %3, %1, %cst {dimension_numbers = #tpu.dot_dimension_numbers<[1], [0], [0], [1], [0, 0, 1, 1], [], []>} : vector<8x16xbf16>, vector<16x32xbf16>, vector<8x32xf32> -> vector<8x32xf32>
    %5 = vector.broadcast %2 : vector<1x32xf32> to vector<8x32xf32>
    %6 = arith.addf %4, %5 : vector<8x32xf32>
    %cst_5 = arith.constant 0.000000e+00 : f32
    %7 = vector.broadcast %cst_5 : f32 to vector<8x32xf32>
    %8 = arith.maximumf %6, %7 : vector<8x32xf32>
    %c0_6 = arith.constant 0 : index
    %c0_7 = arith.constant 0 : index
    %9 = vector.load %arg4[%c0_6, %c0_7] : memref<32x32xbf16, #tpu.memory_space<vmem>>, vector<32x32xbf16>
    %c0_8 = arith.constant 0 : index
    %c0_9 = arith.constant 0 : index
    %10 = vector.load %arg5[%c0_8, %c0_9] : memref<1x32xf32, #tpu.memory_space<vmem>>, vector<1x32xf32>
    %11 = arith.truncf %8 : vector<8x32xf32> to vector<8x32xbf16>
    %cst_10 = arith.constant dense<0.000000e+00> : vector<8x32xf32>
    %12 = tpu.matmul %11, %9, %cst_10 {dimension_numbers = #tpu.dot_dimension_numbers<[1], [0], [0], [1], [0, 0, 1, 1], [], []>} : vector<8x32xbf16>, vector<32x32xbf16>, vector<8x32xf32> -> vector<8x32xf32>
    %13 = vector.broadcast %10 : vector<1x32xf32> to vector<8x32xf32>
    %14 = arith.addf %12, %13 : vector<8x32xf32>
    %cst_11 = arith.constant 0.000000e+00 : f32
    %15 = vector.broadcast %cst_11 : f32 to vector<8x32xf32>
    %16 = arith.maximumf %14, %15 : vector<8x32xf32>
    %c0_12 = arith.constant 0 : index
    %c0_13 = arith.constant 0 : index
    %17 = vector.load %arg6[%c0_12, %c0_13] : memref<32x8xbf16, #tpu.memory_space<vmem>>, vector<32x8xbf16>
    %c0_14 = arith.constant 0 : index
    %c0_15 = arith.constant 0 : index
    %18 = vector.load %arg7[%c0_14, %c0_15] : memref<1x8xf32, #tpu.memory_space<vmem>>, vector<1x8xf32>
    %19 = arith.truncf %16 : vector<8x32xf32> to vector<8x32xbf16>
    %cst_16 = arith.constant dense<0.000000e+00> : vector<8x8xf32>
    %20 = tpu.matmul %19, %17, %cst_16 {dimension_numbers = #tpu.dot_dimension_numbers<[1], [0], [0], [1], [0, 0, 1, 1], [], []>} : vector<8x32xbf16>, vector<32x8xbf16>, vector<8x8xf32> -> vector<8x8xf32>
    %21 = vector.broadcast %18 : vector<1x8xf32> to vector<8x8xf32>
    %22 = arith.addf %20, %21 : vector<8x8xf32>
    %c0_17 = arith.constant 0 : index
    %c0_18 = arith.constant 0 : index
    %23 = vector.load %arg8[%c0_17, %c0_18] : memref<8x8xf32, #tpu.memory_space<vmem>>, vector<8x8xf32>
    tpu.vector_store %arg8[%c0_17, %c0_18], %22 {strides = array<i32>} : memref<8x8xf32, #tpu.memory_space<vmem>>, vector<8x8xf32>,
    return
  }
  func.func @transform_0(%arg0: i32) -> (i32, i32) {
    %c0_i32 = arith.constant 0 : i32
    %c0_i32_0 = arith.constant 0 : i32
    return %arg0, %c0_i32 : i32, i32
  }
  func.func @transform_1(%arg0: i32) -> (i32, i32) {
    %c0_i32 = arith.constant 0 : i32
    %c0_i32_0 = arith.constant 0 : i32
    %c0_i32_1 = arith.constant 0 : i32
    return %c0_i32, %c0_i32_0 : i32, i32
  }
  func.func @transform_2(%arg0: i32) -> (i32, i32) {
    %c0_i32 = arith.constant 0 : i32
    %c0_i32_0 = arith.constant 0 : i32
    %c0_i32_1 = arith.constant 0 : i32
    return %c0_i32, %c0_i32_0 : i32, i32
  }
  func.func @transform_3(%arg0: i32) -> (i32, i32) {
    %c0_i32 = arith.constant 0 : i32
    %c0_i32_0 = arith.constant 0 : i32
    %c0_i32_1 = arith.constant 0 : i32
    return %c0_i32, %c0_i32_0 : i32, i32
  }
  func.func @transform_4(%arg0: i32) -> (i32, i32) {
    %c0_i32 = arith.constant 0 : i32
    %c0_i32_0 = arith.constant 0 : i32
    %c0_i32_1 = arith.constant 0 : i32
    return %c0_i32, %c0_i32_0 : i32, i32
  }
  func.func @transform_5(%arg0: i32) -> (i32, i32) {
    %c0_i32 = arith.constant 0 : i32
    %c0_i32_0 = arith.constant 0 : i32
    %c0_i32_1 = arith.constant 0 : i32
    return %c0_i32, %c0_i32_0 : i32, i32
  }
  func.func @transform_6(%arg0: i32) -> (i32, i32) {
    %c0_i32 = arith.constant 0 : i32
    %c0_i32_0 = arith.constant 0 : i32
    %c0_i32_1 = arith.constant 0 : i32
    return %c0_i32, %c0_i32_0 : i32, i32
  }
  func.func @transform_7(%arg0: i32) -> (i32, i32) {
    %c0_i32 = arith.constant 0 : i32
    %c0_i32_0 = arith.constant 0 : i32
    return %arg0, %c0_i32 : i32, i32
  }
}

</mosaic_0001>

<llo_original>
// kernel: mlp_forward_pallas.1
$region0: #{mlp_forward_pallas.1}
  #allocation0 [shape = 'u32[]', space=smem, size = 0x4, offset = 0x4, fixed_abs, tag = 'smem constant byte address 0x4 - core index']
  #allocation1 [shape = 'u32[144,128]{1,0:T(1,128)}', space=vmem, size = 0x12000, scoped, tag = 'internal scratch']
  %s0 = inlined_call_operand.vmem [shape: f32[16,16], index: 0, kind: input, shape index: {}]
  %s1 = inlined_call_operand.vmem [shape: bf16[16,32], index: 1, kind: input, shape index: {}]
  %s2 = inlined_call_operand.vmem [shape: f32[1,32], index: 2, kind: input, shape index: {}]
  %s3 = inlined_call_operand.hbm [shape: bf16[32,32], index: 3, kind: input, shape index: {}]
  %s4 = inlined_call_operand.vmem [shape: f32[1,32], index: 4, kind: input, shape index: {}]
  %s5 = inlined_call_operand.vmem [shape: bf16[32,8], index: 5, kind: input, shape index: {}]
  %s6 = inlined_call_operand.vmem [shape: f32[1,8], index: 6, kind: input, shape index: {}]
  %s7 = inlined_call_operand.hbm [shape: f32[16,8], index: 7, kind: output, shape index: {}]
  %s8 = sld [smem:[#allocation0]]
  $region65: #{mlp_forward_pallas.1} parent=0
    _
  %s10 = ssub.s32 1, %s8
  %s11 = scalar_select 0, %s10, %s8
  $region1: #{mlp_forward_pallas.1} parent=0
    #allocation2 [shape = 'u8[8192]{0}', space=vmem, size = 0x2000, scoped, tag = 'input window, operand 3, single buffered']
    #allocation3 [shape = 's32[2]{0}', space=sflag, size = 0x8, scoped, tag = 'scoped memory for mlp_forward_pallas.1']
    #allocation4 [shape = 's32[2]{0}', space=sflag, size = 0x8, scoped, tag = 'scoped memory for mlp_forward_pallas.1']
    #allocation5 [shape = 'u8[8192]{0}', space=vmem, size = 0x2000, scoped, tag = 'output window, operand 0']
    %12 = vsyncpa [#allocation3], 0
    %13 = vsyncpa [#allocation4], 0
    %s14 = scalar_lea.sflag [#allocation4], 1
    %15 = vsyncpa %s14, 0
    loop: start=0, step=1, limit=4
    $region2: #{mlp_forward_pallas.1} parent=1 // loop_pre_header
      _
    $region3: #{mlp_forward_pallas.1} parent=1 // loop_header
      %s17 = sphi 0, %s21
      %p18 = scmp.ge.s32.totalorder %s17, 4
      %s27 = sphi 0, %s29
      %s30 = sphi 0, %s27
      %s31 = sphi 0, %s30
      %s47 = sphi 0, %s31
      %s51 = sphi 0, %s51
      %s53 = sphi 0, %s51
      %s54 = sphi 0, %s53
      %s68 = sphi 0, %s54
      %s72 = sphi 0, %s72
      %s74 = sphi 0, %s72
      %s75 = sphi 0, %s74
      %s89 = sphi 0, %s75
      %s93 = sphi 0, %s93
      %s95 = sphi 0, %s93
      %s96 = sphi 0, %s95
      %s110 = sphi 0, %s96
      %s114 = sphi 0, %s114
      %s116 = sphi 0, %s114
      %s117 = sphi 0, %s116
      %s131 = sphi 0, %s117
      %s135 = sphi 0, %s135
      %s137 = sphi 0, %s135
      %s138 = sphi 0, %s137
      %s152 = sphi 0, %s138
      %s156 = sphi 0, %s156
      %s158 = sphi 0, %s156
      %s159 = sphi 0, %s158
      %s173 = sphi 0, %s159
      %s179 = sphi 0, %s181
      %s182 = sphi 0, %s179
      %s183 = sphi 0, %s182
      %s199 = sphi 0, %s183
    $region4: #{mlp_forward_pallas.1} parent=1 // loop_header_branch
      %20 = sbr.rel (%p18) target = $region8
    $region5: #{mlp_forward_pallas.1} parent=1 // loop_body
      %s22 = ssub.s32 %s17, 1
      %s23 = ssub.s32 %s17, 2
      %s24 = sadd.s32 %s17, 1
      %s25 = ssub.s32 %s17, %s24
      %p26 = scmp.eq.s32.totalorder %s25, 0
      %s28 = sadd.s32 %s27, 1
      %s29 = scalar_select %p26, %s27, %s28
      %p32 = pneg %p26
      %p33 = scmp.eq.s32.totalorder %s17, 1
      %p34 = por %p32, %p33
      %p35 = scmp.ne.s32.totalorder %s27, %s30
      %p36 = scmp.eq.s32.totalorder %s17, 0
      %p37 = por %p35, %p36
      %p38 = scmp.ne.s32.totalorder %s27, %s30
      %p39 = scmp.eq.s32.totalorder %s22, 1
      %p40 = por %p38, %p39
      %p41 = scmp.ne.s32.totalorder %s30, %s31
      %p42 = scmp.eq.s32.totalorder %s22, 0
      %p43 = por %p41, %p42
      %p44 = scmp.ne.s32.totalorder %s30, %s31
      %p45 = scmp.eq.s32.totalorder %s23, 1
      %p46 = por %p44, %p45
      %p48 = scmp.ne.s32.totalorder %s31, %s47
      %p49 = scmp.eq.s32.totalorder %s23, 0
      %p50 = por %p48, %p49
      %s52 = sadd.s32 %s51, 1
      %p55 = scmp.eq.s32.totalorder %s17, 1
      %p56 = scmp.ne.s32.totalorder %s51, %s53
      %p57 = scmp.eq.s32.totalorder %s17, 0
      %p58 = por %p56, %p57
      %p59 = scmp.ne.s32.totalorder %s51, %s53
      %p60 = scmp.eq.s32.totalorder %s22, 1
      %p61 = por %p59, %p60
      %p62 = scmp.ne.s32.totalorder %s53, %s54
      %p63 = scmp.eq.s32.totalorder %s22, 0
      %p64 = por %p62, %p63
      %p65 = scmp.ne.s32.totalorder %s53, %s54
      %p66 = scmp.eq.s32.totalorder %s23, 1
      %p67 = por %p65, %p66
      %p69 = scmp.ne.s32.totalorder %s54, %s68
      %p70 = scmp.eq.s32.totalorder %s23, 0
      %p71 = por %p69, %p70
      %s73 = sadd.s32 %s72, 1
      %p76 = scmp.eq.s32.totalorder %s17, 1
      %p77 = scmp.ne.s32.totalorder %s72, %s74
      %p78 = scmp.eq.s32.totalorder %s17, 0
      %p79 = por %p77, %p78
      %p80 = scmp.ne.s32.totalorder %s72, %s74
      %p81 = scmp.eq.s32.totalorder %s22, 1
      %p82 = por %p80, %p81
      %p83 = scmp.ne.s32.totalorder %s74, %s75
      %p84 = scmp.eq.s32.totalorder %s22, 0
      %p85 = por %p83, %p84
      %p86 = scmp.ne.s32.totalorder %s74, %s75
      %p87 = scmp.eq.s32.totalorder %s23, 1
      %p88 = por %p86, %p87
      %p90 = scmp.ne.s32.totalorder %s75, %s89
      %p91 = scmp.eq.s32.totalorder %s23, 0
      %p92 = por %p90, %p91
      %s94 = sadd.s32 %s93, 1
      %p97 = scmp.eq.s32.totalorder %s17, 1
      %p98 = scmp.ne.s32.totalorder %s93, %s95
      %p99 = scmp.eq.s32.totalorder %s17, 0
      %p100 = por %p98, %p99
      %p101 = scmp.ne.s32.totalorder %s93, %s95
      %p102 = scmp.eq.s32.totalorder %s22, 1
      %p103 = por %p101, %p102
      %p104 = scmp.ne.s32.totalorder %s95, %s96
      %p105 = scmp.eq.s32.totalorder %s22, 0
      %p106 = por %p104, %p105
      %p107 = scmp.ne.s32.totalorder %s95, %s96
      %p108 = scmp.eq.s32.totalorder %s23, 1
      %p109 = por %p107, %p108
      %p111 = scmp.ne.s32.totalorder %s96, %s110
      %p112 = scmp.eq.s32.totalorder %s23, 0
      %p113 = por %p111, %p112
      %s115 = sadd.s32 %s114, 1
      %p118 = scmp.eq.s32.totalorder %s17, 1
      %p119 = scmp.ne.s32.totalorder %s114, %s116
      %p120 = scmp.eq.s32.totalorder %s17, 0
      %p121 = por %p119, %p120
      %p122 = scmp.ne.s32.totalorder %s114, %s116
      %p123 = scmp.eq.s32.totalorder %s22, 1
      %p124 = por %p122, %p123
      %p125 = scmp.ne.s32.totalorder %s116, %s117
      %p126 = scmp.eq.s32.totalorder %s22, 0
      %p127 = por %p125, %p126
      %p128 = scmp.ne.s32.totalorder %s116, %s117
      %p129 = scmp.eq.s32.totalorder %s23, 1
      %p130 = por %p128, %p129
      %p132 = scmp.ne.s32.totalorder %s117, %s131
      %p133 = scmp.eq.s32.totalorder %s23, 0
      %p134 = por %p132, %p133
      %s136 = sadd.s32 %s135, 1
      %p139 = scmp.eq.s32.totalorder %s17, 1
      %p140 = scmp.ne.s32.totalorder %s135, %s137
      %p141 = scmp.eq.s32.totalorder %s17, 0
      %p142 = por %p140, %p141
      %p143 = scmp.ne.s32.totalorder %s135, %s137
      %p144 = scmp.eq.s32.totalorder %s22, 1
      %p145 = por %p143, %p144
      %p146 = scmp.ne.s32.totalorder %s137, %s138
      %p147 = scmp.eq.s32.totalorder %s22, 0
      %p148 = por %p146, %p147
      %p149 = scmp.ne.s32.totalorder %s137, %s138
      %p150 = scmp.eq.s32.totalorder %s23, 1
      %p151 = por %p149, %p150
      %p153 = scmp.ne.s32.totalorder %s138, %s152
      %p154 = scmp.eq.s32.totalorder %s23, 0
      %p155 = por %p153, %p154
      %s157 = sadd.s32 %s156, 1
      %p160 = scmp.eq.s32.totalorder %s17, 1
      %p161 = scmp.ne.s32.totalorder %s156, %s158
      %p162 = scmp.eq.s32.totalorder %s17, 0
      %p163 = por %p161, %p162
      %p164 = scmp.ne.s32.totalorder %s156, %s158
      %p165 = scmp.eq.s32.totalorder %s22, 1
      %p166 = por %p164, %p165
      %p167 = scmp.ne.s32.totalorder %s158, %s159
      %p168 = scmp.eq.s32.totalorder %s22, 0
      %p169 = por %p167, %p168
      %p170 = scmp.ne.s32.totalorder %s158, %s159
      %p171 = scmp.eq.s32.totalorder %s23, 1
      %p172 = por %p170, %p171
      %p174 = scmp.ne.s32.totalorder %s159, %s173
      %p175 = scmp.eq.s32.totalorder %s23, 0
      %p176 = por %p174, %p175
      %s177 = ssub.s32 %s17, %s24
      %p178 = scmp.eq.s32.totalorder %s177, 0
      %s180 = sadd.s32 %s179, 1
      %s181 = scalar_select %p178, %s179, %s180
      %p184 = pneg %p178
      %p185 = scmp.eq.s32.totalorder %s17, 1
      %p186 = por %p184, %p185
      %p187 = scmp.ne.s32.totalorder %s179, %s182
      %p188 = scmp.eq.s32.totalorder %s17, 0
      %p189 = por %p187, %p188
      %p190 = scmp.ne.s32.totalorder %s179, %s182
      %p191 = scmp.eq.s32.totalorder %s22, 1
      %p192 = por %p190, %p191
      %p193 = scmp.ne.s32.totalorder %s182, %s183
      %p194 = scmp.eq.s32.totalorder %s22, 0
      %p195 = por %p193, %p194
      %p196 = scmp.ne.s32.totalorder %s182, %s183
      %p197 = scmp.eq.s32.totalorder %s23, 1
      %p198 = por %p196, %p197
      %p200 = scmp.ne.s32.totalorder %s183, %s199
      %p201 = scmp.eq.s32.totalorder %s23, 0
      %p202 = por %p200, %p201
      %p203 = scmp.le.s32.totalorder 1, %s17
      %p204 = scmp.lt.s32.totalorder %s17, 3
      %p205 = pnand %p203, %p204
      %p206 = pneg %p205
      // Predicated region
      $region9: #{mlp_forward_pallas.1} parent=5 // pred_check
        _
      $region10: #{mlp_forward_pallas.1} parent=5 // pred_check_branch
        %208 = sbr.rel (%p205) target = $region12
      $region11: #{mlp_forward_pallas.1} parent=5 // pred_region
        %s209 = ssub.s32 %s17, 1
        // Predicated region
        $region13: #{mlp_forward_pallas.1} parent=11 // pred_check
          %p210 = pneg %p64
        $region14: #{mlp_forward_pallas.1} parent=11 // pred_check_branch
          %212 = sbr.rel (%p210) target = $region16
        $region15: #{mlp_forward_pallas.1} parent=11 // pred_region
          _
        $region16: #{mlp_forward_pallas.1} parent=11 // pred_fallthru
          _
        // Predicated region
        $region17: #{mlp_forward_pallas.1} parent=11 // pred_check
          %p213 = pneg %p85
        $region18: #{mlp_forward_pallas.1} parent=11 // pred_check_branch
          %215 = sbr.rel (%p213) target = $region20
        $region19: #{mlp_forward_pallas.1} parent=11 // pred_region
          _
        $region20: #{mlp_forward_pallas.1} parent=11 // pred_fallthru
          _
        // Predicated region
        $region21: #{mlp_forward_pallas.1} parent=11 // pred_check
          %p216 = pneg %p106
        $region22: #{mlp_forward_pallas.1} parent=11 // pred_check_branch
          %218 = sbr.rel (%p216) target = $region24
        $region23: #{mlp_forward_pallas.1} parent=11 // pred_region
          %s220 = ssub.s32 256, 256
          %221 = vsyncadd [#allocation3], %s220
          %s222 = sshll.u32 [#allocation2], 4
          %s223 = int_to_ptr.vmem [resolvable:$true] %s222
          %228 = dma.hbm_to_vmem [thread:$0]  %s3, 256, %s223, [#allocation3], 64, 64, 4
        $region24: #{mlp_forward_pallas.1} parent=11 // pred_fallthru
          _
        // Predicated region
        $region25: #{mlp_forward_pallas.1} parent=11 // pred_check
          %p229 = pneg %p127
        $region26: #{mlp_forward_pallas.1} parent=11 // pred_check_branch
          %231 = sbr.rel (%p229) target = $region28
        $region27: #{mlp_forward_pallas.1} parent=11 // pred_region
          _
        $region28: #{mlp_forward_pallas.1} parent=11 // pred_fallthru
          _
        // Predicated region
        $region29: #{mlp_forward_pallas.1} parent=11 // pred_check
          %p232 = pneg %p148
        $region30: #{mlp_forward_pallas.1} parent=11 // pred_check_branch
          %234 = sbr.rel (%p232) target = $region32
        $region31: #{mlp_forward_pallas.1} parent=11 // pred_region
          _
        $region32: #{mlp_forward_pallas.1} parent=11 // pred_fallthru
          _
        // Predicated region
        $region33: #{mlp_forward_pallas.1} parent=11 // pred_check
          %p235 = pneg %p169
        $region34: #{mlp_forward_pallas.1} parent=11 // pred_check_branch
          %237 = sbr.rel (%p235) target = $region36
        $region35: #{mlp_forward_pallas.1} parent=11 // pred_region
          _
        $region36: #{mlp_forward_pallas.1} parent=11 // pred_fallthru
          _
      $region12: #{mlp_forward_pallas.1} parent=5 // pred_fallthru
        _
      %p238 = scmp.lt.s32.totalorder %s17, 2
      // Predicated region
      $region37: #{mlp_forward_pallas.1} parent=5 // pred_check
        %p239 = pneg %p238
      $region38: #{mlp_forward_pallas.1} parent=5 // pred_check_branch
        %241 = sbr.rel (%p239) target = $region40
      $region39: #{mlp_forward_pallas.1} parent=5 // pred_region
        // Predicated region
        $region41: #{mlp_forward_pallas.1} parent=39 // pred_check
          %p242 = pneg %p37
        $region42: #{mlp_forward_pallas.1} parent=39 // pred_check_branch
          %244 = sbr.rel (%p242) target = $region44
        $region43: #{mlp_forward_pallas.1} parent=39 // pred_region
          %p245 = scmp.lt.s32.totalorder %s17, 1
          %s246 = scalar_select %p245, %s17, 1
          %s247 = smul.addr %s246, 8
          %s248 = scalar_lea.vmem %s0, %s247
        $region44: #{mlp_forward_pallas.1} parent=39 // pred_fallthru
          _
      $region40: #{mlp_forward_pallas.1} parent=5 // pred_fallthru
        _
      %p249 = scmp.le.s32.totalorder 1, %s17
      %p250 = scmp.lt.s32.totalorder %s17, 3
      %p251 = pnand %p249, %p250
      %p252 = pneg %p251
      // Predicated region
      $region45: #{mlp_forward_pallas.1} parent=5 // pred_check
        _
      $region46: #{mlp_forward_pallas.1} parent=5 // pred_check_branch
        %254 = sbr.rel (%p251) target = $region48
      $region47: #{mlp_forward_pallas.1} parent=5 // pred_region
        %s255 = ssub.s32 %s17, 1
        // Predicated region
        $region49: #{mlp_forward_pallas.1} parent=47 // pred_check
          %p256 = pneg %p106
        $region50: #{mlp_forward_pallas.1} parent=47 // pred_check_branch
          %258 = sbr.rel (%p256) target = $region52
        $region51: #{mlp_forward_pallas.1} parent=47 // pred_region
          %259 = dma.done [#allocation3], 256
        $region52: #{mlp_forward_pallas.1} parent=47 // pred_fallthru
          _
        %p260 = scmp.lt.s32.totalorder %s22, 1
        %s261 = scalar_select %p260, %s22, 1
        %s262 = smul.addr %s261, 8
        %s263 = scalar_lea.vmem %s0, %s262
        %p264 = pneg %p43
        %p265 = pneg %p40
        %p266 = pneg %p64
        %p267 = pneg %p61
        %p268 = pneg %p85
        %p269 = pneg %p82
        %p270 = pneg %p106
        %p271 = pneg %p103
        %p272 = pneg %p127
        %p273 = pneg %p124
        %p274 = pneg %p148
        %p275 = pneg %p145
        %p276 = pneg %p169
        %p277 = pneg %p166
        %p278 = pneg %p195
        %p279 = pneg %p192
        %s280 = sand.u32 %s182, 1
        %s281 = scalar_lea.sflag [#allocation4], %s280
        %s282 = sand.u32 %s182, 1
        %s283 = smul.addr %s282, 8
        %s284 = scalar_lea.vmem [#allocation5], %s283
        %p285 = scmp.lt.s32.totalorder %s22, 1
        %s286 = scalar_select %p285, %s22, 1
        %s287 = smul.addr %s286, 8
        %s288 = scalar_lea.vmem %s0, %s287
        %v290 = vld [vmem:[%s288] sm:$0xff]
        %v291 = vld [vmem:[%s1] sm:$0xf]
        %v292 = vld [vmem:[%s1 + $0x4] sm:$0xf]
        %v293 = vld [vmem:[%s2] sm:$0x1]
        %v294 = vpack.c.bf16 %v290, %v290
        %v296 = vlaneseq
        %v297 = vshrl.u32 %v296, 7
        %v298 = vsub.s32 0, %v297
        %v299 = vrot.slane %v293, %v298
        %v303 = vunpack.c.l.b16 %v291
        %v304 = vunpack.c.l.b16 %v292
        %v305 = vpack.c.b16 %v304, %v303
        %vm307 = vcmask 130048
        %v309 = vsel %vm307, %v294, 0
        %311 = vmatprep.subr.bf16.mxu0 0
        %312 = vmatpush1.bf16.msra.mxu0 %v305
        %313 = vmatprep.subr.bf16.mxu0 0
        %314 = vmatpush1.bf16.msra.mxu0 0
        %315 = vmatprep.subr.bf16.mxu0 0
        %316 = vmatpush1.bf16.msra.mxu0 0
        %317 = vmatprep.subr.bf16.mxu0 0
        %318 = vmatpush1.bf16.msra.mxu0 0
        %319 = vmatprep.subr.bf16.mxu0 0
        %320 = vmatpush1.bf16.msra.mxu0 0
        %321 = vmatprep.subr.bf16.mxu0 0
        %322 = vmatpush1.bf16.msra.mxu0 0
        %323 = vmatprep.subr.bf16.mxu0 0
        %324 = vmatpush1.bf16.msra.mxu0 0
        %325 = vmatprep.subr.bf16.mxu0 0
        %326 = vmatpush1.bf16.msra.mxu0 0
        %327 = vmatprep.subr.bf16.mxu0 0
        %328 = vmatpush1.bf16.msra.mxu0 0
        %329 = vmatprep.subr.bf16.mxu0 0
        %330 = vmatpush1.bf16.msra.mxu0 0
        %331 = vmatprep.subr.bf16.mxu0 0
        %332 = vmatpush1.bf16.msra.mxu0 0
        %333 = vmatprep.subr.bf16.mxu0 0
        %334 = vmatpush1.bf16.msra.mxu0 0
        %335 = vmatprep.subr.bf16.mxu0 0
        %336 = vmatpush1.bf16.msra.mxu0 0
        %337 = vmatprep.subr.bf16.mxu0 0
        %338 = vmatpush1.bf16.msra.mxu0 0
        %339 = vmatprep.subr.bf16.mxu0 0
        %340 = vmatpush1.bf16.msra.mxu0 0
        %341 = vmatprep.subr.bf16.mxu0 0
        %342 = vmatpush1.bf16.msra.mxu0 0
        %343 = vmatprep.mubr.bf16.mxu0 0
        %344 = vmatmul.mubr.bf16.gmra.mrb[0].mxu0 %v309
        %v345 = vpop.f32.mrb[0].mxu0
        %v346 = vadd.f32 %v299, %v345
        %v347 = vpop.f32.mrb[0].mxu0
        %v348 = vpop.f32.mrb[0].mxu0
        %v349 = vpop.f32.mrb[0].mxu0
        %350 = vdwg.mxu0
        %v351 = vmax.f32 %v346, 0.0
        %v352 = vld [vmem:[#allocation2] sm:$0xf]
        %v353 = vld [vmem:[#allocation2 + $0x4] sm:$0xf]
        %v354 = vld [vmem:[#allocation2 + $0x8] sm:$0xf]
        %v355 = vld [vmem:[#allocation2 + $0xc] sm:$0xf]
        %v356 = vld [vmem:[%s4] sm:$0x1]
        %v357 = vpack.c.bf16 %v351, %v351
        %v359 = vlaneseq
        %v360 = vshrl.u32 %v359, 7
        %v361 = vsub.s32 0, %v360
        %v362 = vrot.slane %v356, %v361
        %v368 = vunpack.c.l.b16 %v352
        %v369 = vunpack.c.l.b16 %v353
        %v370 = vunpack.c.l.b16 %v354
        %v371 = vunpack.c.l.b16 %v355
        %v372 = vpack.c.b16 %v369, %v368
        %v373 = vpack.c.b16 %v371, %v370
        %vm376 = vcmask 261120
        %v378 = vsel %vm376, %v357, 0
        %380 = vmatprep.subr.bf16.mxu0 0
        %381 = vmatpush1.bf16.msra.mxu0 %v372
        %382 = vmatprep.subr.bf16.mxu0 0
        %383 = vmatpush1.bf16.msra.mxu0 %v373
        %384 = vmatprep.subr.bf16.mxu0 0
        %385 = vmatpush1.bf16.msra.mxu0 0
        %386 = vmatprep.subr.bf16.mxu0 0
        %387 = vmatpush1.bf16.msra.mxu0 0
        %388 = vmatprep.subr.bf16.mxu0 0
        %389 = vmatpush1.bf16.msra.mxu0 0
        %390 = vmatprep.subr.bf16.mxu0 0
        %391 = vmatpush1.bf16.msra.mxu0 0
        %392 = vmatprep.subr.bf16.mxu0 0
        %393 = vmatpush1.bf16.msra.mxu0 0
        %394 = vmatprep.subr.bf16.mxu0 0
        %395 = vmatpush1.bf16.msra.mxu0 0
        %396 = vmatprep.subr.bf16.mxu0 0
        %397 = vmatpush1.bf16.msra.mxu0 0
        %398 = vmatprep.subr.bf16.mxu0 0
        %399 = vmatpush1.bf16.msra.mxu0 0
        %400 = vmatprep.subr.bf16.mxu0 0
        %401 = vmatpush1.bf16.msra.mxu0 0
        %402 = vmatprep.subr.bf16.mxu0 0
        %403 = vmatpush1.bf16.msra.mxu0 0
        %404 = vmatprep.subr.bf16.mxu0 0
        %405 = vmatpush1.bf16.msra.mxu0 0
        %406 = vmatprep.subr.bf16.mxu0 0
        %407 = vmatpush1.bf16.msra.mxu0 0
        %408 = vmatprep.subr.bf16.mxu0 0
        %409 = vmatpush1.bf16.msra.mxu0 0
        %410 = vmatprep.subr.bf16.mxu0 0
        %411 = vmatpush1.bf16.msra.mxu0 0
        %412 = vmatprep.mubr.bf16.mxu0 0
        %413 = vmatmul.mubr.bf16.gmra.mrb[0].mxu0 %v378
        %v414 = vpop.f32.mrb[0].mxu0
        %v415 = vadd.f32 %v362, %v414
        %v416 = vpop.f32.mrb[0].mxu0
        %v417 = vpop.f32.mrb[0].mxu0
        %v418 = vpop.f32.mrb[0].mxu0
        %419 = vdwg.mxu0
        %v420 = vmax.f32 %v415, 0.0
        %v421 = vld [vmem:[%s5] sm:$0xf]
        %v422 = vld [vmem:[%s5 + $0x4] sm:$0xf]
        %v423 = vld [vmem:[%s5 + $0x8] sm:$0xf]
        %v424 = vld [vmem:[%s5 + $0xc] sm:$0xf]
        %v425 = vld [vmem:[%s6] sm:$0x1]
        %v426 = vpack.c.bf16 %v420, %v420
        %v428 = vlaneseq
        %v429 = vshrl.u32 %v428, 7
        %v430 = vsub.s32 0, %v429
        %v431 = vrot.slane %v425, %v430
        %v437 = vunpack.c.l.b16 %v421
        %v438 = vunpack.c.l.b16 %v422
        %v439 = vunpack.c.l.b16 %v423
        %v440 = vunpack.c.l.b16 %v424
        %v441 = vpack.c.b16 %v438, %v437
        %v442 = vpack.c.b16 %v440, %v439
        %v446 = vsel %vm376, %v426, 0
        %448 = vmatprep.subr.bf16.mxu0 0
        %449 = vmatpush1.bf16.msra.mxu0 %v441
        %450 = vmatprep.subr.bf16.mxu0 0
        %451 = vmatpush1.bf16.msra.mxu0 %v442
        %452 = vmatprep.subr.bf16.mxu0 0
        %453 = vmatpush1.bf16.msra.mxu0 0
        %454 = vmatprep.subr.bf16.mxu0 0
        %455 = vmatpush1.bf16.msra.mxu0 0
        %456 = vmatprep.subr.bf16.mxu0 0
        %457 = vmatpush1.bf16.msra.mxu0 0
        %458 = vmatprep.subr.bf16.mxu0 0
        %459 = vmatpush1.bf16.msra.mxu0 0
        %460 = vmatprep.subr.bf16.mxu0 0
        %461 = vmatpush1.bf16.msra.mxu0 0
        %462 = vmatprep.subr.bf16.mxu0 0
        %463 = vmatpush1.bf16.msra.mxu0 0
        %464 = vmatprep.subr.bf16.mxu0 0
        %465 = vmatpush1.bf16.msra.mxu0 0
        %466 = vmatprep.subr.bf16.mxu0 0
        %467 = vmatpush1.bf16.msra.mxu0 0
        %468 = vmatprep.subr.bf16.mxu0 0
        %469 = vmatpush1.bf16.msra.mxu0 0
        %470 = vmatprep.subr.bf16.mxu0 0
        %471 = vmatpush1.bf16.msra.mxu0 0
        %472 = vmatprep.subr.bf16.mxu0 0
        %473 = vmatpush1.bf16.msra.mxu0 0
        %474 = vmatprep.subr.bf16.mxu0 0
        %475 = vmatpush1.bf16.msra.mxu0 0
        %476 = vmatprep.subr.bf16.mxu0 0
        %477 = vmatpush1.bf16.msra.mxu0 0
        %478 = vmatprep.subr.bf16.mxu0 0
        %479 = vmatpush1.bf16.msra.mxu0 0
        %480 = vmatprep.mubr.bf16.mxu0 0
        %481 = vmatmul.mubr.bf16.gmra.mrb[0].mxu0 %v446
        %v482 = vpop.f32.mrb[0].mxu0
        %v483 = vadd.f32 %v431, %v482
        %v484 = vpop.f32.mrb[0].mxu0
        %v485 = vpop.f32.mrb[0].mxu0
        %v486 = vpop.f32.mrb[0].mxu0
        %487 = vdwg.mxu0
        %vm488 = vcmask 64512
        %489 = vst.msk [vmem:[%s284] sm:$0xff] %vm488, %v483
        %s490 = sand.u32 %s182, 1
        %s491 = scalar_lea.sflag [#allocation4], %s490
        %s492 = sand.u32 %s182, 1
        %s493 = smul.addr %s492, 8
        %s494 = scalar_lea.vmem [#allocation5], %s493
        // Predicated region
        $region53: #{mlp_forward_pallas.1} parent=47 // pred_check
          %p495 = pneg %p192
        $region54: #{mlp_forward_pallas.1} parent=47 // pred_check_branch
          %497 = sbr.rel (%p495) target = $region56
        $region55: #{mlp_forward_pallas.1} parent=47 // pred_region
          %s499 = ssub.s32 128, 128
          %500 = vsyncadd %s491, %s499
          %s501 = smul.addr %s22, 128
          %s502 = scalar_lea.hbm %s7, %s501
          %s504 = sshll.u32 %s494, 4
          %s505 = int_to_ptr.vmem [resolvable:$true] %s504
          %507 = dma.vmem_to_hbm [thread:$0]  %s505, 128, %s502, %s491
        $region56: #{mlp_forward_pallas.1} parent=47 // pred_fallthru
          _
      $region48: #{mlp_forward_pallas.1} parent=5 // pred_fallthru
        _
      %p508 = scmp.le.s32.totalorder 2, %s17
      // Predicated region
      $region57: #{mlp_forward_pallas.1} parent=5 // pred_check
        %p509 = pneg %p508
      $region58: #{mlp_forward_pallas.1} parent=5 // pred_check_branch
        %511 = sbr.rel (%p509) target = $region60
      $region59: #{mlp_forward_pallas.1} parent=5 // pred_region
        %s512 = ssub.s32 %s17, 2
        // Predicated region
        $region61: #{mlp_forward_pallas.1} parent=59 // pred_check
          %p513 = pneg %p198
        $region62: #{mlp_forward_pallas.1} parent=59 // pred_check_branch
          %515 = sbr.rel (%p513) target = $region64
        $region63: #{mlp_forward_pallas.1} parent=59 // pred_region
          %s516 = sand.u32 %s183, 1
          %s517 = scalar_lea.sflag [#allocation4], %s516
          %s518 = sand.u32 %s183, 1
          %s519 = smul.addr %s518, 8
          %s520 = scalar_lea.vmem [#allocation5], %s519
          %521 = dma.done %s517, 128
        $region64: #{mlp_forward_pallas.1} parent=59 // pred_fallthru
          _
      $region60: #{mlp_forward_pallas.1} parent=5 // pred_fallthru
        _
    $region6: #{mlp_forward_pallas.1} parent=1 // loop_footer
      %s21 = sadd.s32 1, %s17
    $region7: #{mlp_forward_pallas.1} parent=1 // loop_footer_branch
      %16 = sbr.rel target = $region3
    $region8: #{mlp_forward_pallas.1} parent=1 // loop_exit
      _
    %522 = vsyncpa [#allocation3], 1
    %s523 = scalar_lea.sflag [#allocation3], 1
    %524 = vsyncpa %s523, 1
    %525 = vsyncpa [#allocation4], 1
    %s526 = scalar_lea.sflag [#allocation4], 1
    %527 = vsyncpa %s526, 1

</llo_original>
